<compile_context>
chip_gen: v6e
topology: v6e:2x2x1
jax: 0.10.0
libtpu: 0.0.40
codegen_flags: <defaults>
</compile_context>

<pallas_src>
import functools

import jax
import jax.numpy as jnp
from jax import lax
from jax.experimental import pallas as pl
from jax.experimental.pallas import tpu as pltpu

LANES = 128
SUBLANES = 8
CHUNK_ROWS = 64              # 64 x 128 f32 = 8 vregs per operand per chunk
MAX_TILE_BYTES = 1 << 20     # ~1 MiB per input tile (~85% HBM roofline regime)
MAX_UNROLL = 8               # small unroll of the chunk loop


def _round_up(v, m):
    return (v + m - 1) // m * m


def _plcc_moments_kernel(x_ref, y_ref, out_ref, *, rows_valid, tile_r, ragged):
    """Writes this tile's partial moments [Sx, Sy, Sxy, Sxx, Syy] as (8,128) slabs."""
    i = pl.program_id(0)
    nchunks = tile_r // CHUNK_ROWS

    def fold(v):
        # (CHUNK_ROWS, 128) -> (8, 128): pure VPU element-wise adds, no XLU.
        return jnp.sum(v.reshape(CHUNK_ROWS // SUBLANES, SUBLANES, LANES), axis=0)

    def make_body(masked):
        def body(c, carry):
            sx, sy, sxy, sxx, syy = carry
            r = pl.multiple_of(c * CHUNK_ROWS, CHUNK_ROWS)
            xc = x_ref[pl.ds(r, CHUNK_ROWS), :].astype(jnp.float32)
            yc = y_ref[pl.ds(r, CHUNK_ROWS), :].astype(jnp.float32)
            if masked:
                # Zero rows past the true row count (the DMA of a partial block
                # leaves that region of the VMEM window undefined).
                local = lax.broadcasted_iota(jnp.int32, (CHUNK_ROWS, LANES), 0)
                limit = rows_valid - i * tile_r - r
                keep = local < limit
                xc = jnp.where(keep, xc, 0.0)
                yc = jnp.where(keep, yc, 0.0)
            return (sx + fold(xc),
                    sy + fold(yc),
                    sxy + fold(xc * yc),
                    sxx + fold(xc * xc),
                    syy + fold(yc * yc))
        return body

    def run_and_store(masked):
        zeros = jnp.zeros((SUBLANES, LANES), jnp.float32)
        init = (zeros, zeros, zeros, zeros, zeros)
        sx, sy, sxy, sxx, syy = lax.fori_loop(
            0, nchunks, make_body(masked), init,
            unroll=min(MAX_UNROLL, nchunks))
        out_ref[0, 0, :, :] = sx
        out_ref[0, 1, :, :] = sy
        out_ref[0, 2, :, :] = sxy
        out_ref[0, 3, :, :] = sxx
        out_ref[0, 4, :, :] = syy

    if ragged:
        last = pl.num_programs(0) - 1

        @pl.when(i != last)
        def _full_tile():
            run_and_store(False)

        @pl.when(i == last)
        def _ragged_tile():
            run_and_store(True)
    else:
        run_and_store(False)


def plcc_loss(inp, tgt, *, max_tile_bytes=MAX_TILE_BYTES):
    """Pearson-correlation loss computed with a Pallas TPU kernel.

    Accepts arrays of any (identical) shape/dtype, returns an f32 scalar.
    """
    assert inp.shape == tgt.shape, "input/target must have the same shape"
    n = inp.size
    assert n > 0

    x = inp.reshape(-1)          # reshape of a contiguous array: no HBM copy
    y = tgt.reshape(-1)

    rows = pl.cdiv(n, LANES)
    itemsize = max(inp.dtype.itemsize, tgt.dtype.itemsize)
    budget_rows = max(
        CHUNK_ROWS,
        (max_tile_bytes // (LANES * itemsize)) // CHUNK_ROWS * CHUNK_ROWS)

    if rows >= budget_rows:
        # Large input: fixed ~1 MiB tiles, ragged last tile masked in-kernel.
        tile_r = budget_rows
        rows_2d = rows
    else:
        # Small input: single tile, pad at most CHUNK_ROWS-1 zero rows.
        tile_r = _round_up(rows, CHUNK_ROWS)
        rows_2d = tile_r

    n_2d = rows_2d * LANES
    if n_2d != n:
        # Only hit when n % 128 != 0 or the input is tiny (<1 MiB); padded
        # zeros contribute 0 to every moment and the true n is used below.
        # TODO(synk): a 1-D-input kernel could avoid this copy for odd n.
        x = jnp.pad(x, (0, n_2d - n))
        y = jnp.pad(y, (0, n_2d - n))
    x2d = x.reshape(rows_2d, LANES)
    y2d = y.reshape(rows_2d, LANES)

    num_tiles = pl.cdiv(rows_2d, tile_r)
    ragged = (rows_2d % tile_r) != 0

    kernel = functools.partial(_plcc_moments_kernel,
                               rows_valid=rows_2d, tile_r=tile_r, ragged=ragged)

    out = pl.pallas_call(
        kernel,
        out_shape=jax.ShapeDtypeStruct((num_tiles, 5, SUBLANES, LANES),
                                       jnp.float32),
        grid=(num_tiles,),
        in_specs=[
            pl.BlockSpec((tile_r, LANES), lambda i: (i, 0)),
            pl.BlockSpec((tile_r, LANES), lambda i: (i, 0)),
        ],
        out_specs=pl.BlockSpec((1, 5, SUBLANES, LANES),
                               lambda i: (i, 0, 0, 0)),
        compiler_params=pltpu.CompilerParams(
            dimension_semantics=("parallel",)),
        cost_estimate=pl.CostEstimate(
            flops=8 * n,
            transcendentals=0,
            bytes_accessed=n_2d * (inp.dtype.itemsize + tgt.dtype.itemsize)
                           + num_tiles * 5 * SUBLANES * LANES * 4),
    )(x2d, y2d)

    # Tiny cross-tile / cross-lane combine + finalize in plain JAX.
    m = jnp.sum(out, axis=(0, 2, 3))     # (5,) = [Sx, Sy, Sxy, Sxx, Syy]
    s_x, s_y, s_xy, s_xx, s_yy = m[0], m[1], m[2], m[3], m[4]
    cov = s_xy - s_x * s_y / n
    var_x = s_xx - s_x * s_x / n
    var_y = s_yy - s_y * s_y / n
    return cov / (jnp.sqrt(var_x) * jnp.sqrt(var_y))


def plcc_loss_ref(inp, tgt):
    """Pure-JAX reference matching the PyTorch module (two-pass)."""
    x = inp.astype(jnp.float32)
    y = tgt.astype(jnp.float32)
    x0 = x - jnp.mean(x)
    y0 = y - jnp.mean(y)
    return jnp.sum(x0 * y0) / (
        jnp.sqrt(jnp.sum(x0 ** 2)) * jnp.sqrt(jnp.sum(y0 ** 2)))


if __name__ == "__main__":
    key = jax.random.PRNGKey(0)
    k1, k2, k3, k4 = jax.random.split(key, 4)

    # Primary small example consistent with a (B, C, H, W) prediction/target.
    shape = (2, 4, 16, 16)
    x = jax.random.normal(k1, shape, dtype=jnp.float32)
    y = 0.7 * x + 0.3 * jax.random.normal(k2, shape, dtype=jnp.float32)
    loss = jax.block_until_ready(plcc_loss(x, y))
    ref = plcc_loss_ref(x, y)
    assert jnp.allclose(loss, ref, atol=1e-5, rtol=1e-5), (loss, ref)

    # Secondary check: exercise the multi-tile + ragged-last-tile (masked)
    # path by shrinking the tile budget; still a small input (66 rows x 128).
    shape2 = (2, 4, 33, 32)            # n = 8448 = 66 * 128 (zero-copy path)
    x2 = jax.random.normal(k3, shape2, dtype=jnp.float32)
    y2 = 0.5 * x2 + 0.5 * jax.random.normal(k4, shape2, dtype=jnp.float32)
    loss2 = jax.block_until_ready(
        plcc_loss(x2, y2, max_tile_bytes=CHUNK_ROWS * LANES * 4))
    ref2 = plcc_loss_ref(x2, y2)
    assert jnp.allclose(loss2, ref2, atol=1e-5, rtol=1e-5), (loss2, ref2)

    print("KERNEL_OK")
</pallas_src>

<mosaic_0001>
module attributes {stable_mosaic.version = 11 : i64} {
  func.func @_plcc_moments_kernel(%arg0: i32, %arg1: memref<64x128xf32, #tpu.memory_space<vmem>>, %arg2: memref<64x128xf32, #tpu.memory_space<vmem>>, %arg3: memref<1x5x8x128xf32, #tpu.memory_space<vmem>>) attributes {dimension_semantics = [#tpu.dimension_semantics<parallel>], iteration_bounds = array<i64: 1>, scalar_prefetch = 0 : i64, scratch_operands = 0 : i64, tpu.core_type = #tpu.core_type<tc>, window_params = [{transform_indices = @transform_0, window_bounds = array<i64: 64, 128>}, {transform_indices = @transform_1, window_bounds = array<i64: 64, 128>}, {transform_indices = @transform_2, window_bounds = array<i64: 1, 5, 8, 128>}]} {
    %cst = arith.constant 0.000000e+00 : f32
    %0 = vector.broadcast %cst : f32 to vector<8x128xf32>
    %c0_i32 = arith.constant 0 : i32
    %c64_i32 = arith.constant 64 : i32
    %1 = arith.muli %c0_i32, %c64_i32 : i32
    %2 = tpu.assume_multiple %1, 64 : i32
    %3 = arith.index_cast %2 : i32 to index
    %c0 = arith.constant 0 : index
    %4 = vector.load %arg1[%3, %c0] : memref<64x128xf32, #tpu.memory_space<vmem>>, vector<64x128xf32>
    %5 = arith.index_cast %2 : i32 to index
    %c0_0 = arith.constant 0 : index
    %6 = vector.load %arg2[%5, %c0_0] : memref<64x128xf32, #tpu.memory_space<vmem>>, vector<64x128xf32>
    %7 = vector.shape_cast %4 : vector<64x128xf32> to vector<8x8x128xf32>
    %cst_1 = arith.constant dense<0.000000e+00> : vector<8x128xf32>
    %8 = vector.multi_reduction <add>, %7, %cst_1 [0] : vector<8x8x128xf32> to vector<8x128xf32>
    %9 = arith.addf %0, %8 : vector<8x128xf32>
    %10 = vector.shape_cast %6 : vector<64x128xf32> to vector<8x8x128xf32>
    %cst_2 = arith.constant dense<0.000000e+00> : vector<8x128xf32>
    %11 = vector.multi_reduction <add>, %10, %cst_2 [0] : vector<8x8x128xf32> to vector<8x128xf32>
    %12 = arith.addf %0, %11 : vector<8x128xf32>
    %13 = arith.mulf %4, %6 : vector<64x128xf32>
    %14 = vector.shape_cast %13 : vector<64x128xf32> to vector<8x8x128xf32>
    %cst_3 = arith.constant dense<0.000000e+00> : vector<8x128xf32>
    %15 = vector.multi_reduction <add>, %14, %cst_3 [0] : vector<8x8x128xf32> to vector<8x128xf32>
    %16 = arith.addf %0, %15 : vector<8x128xf32>
    %17 = arith.mulf %4, %4 : vector<64x128xf32>
    %18 = vector.shape_cast %17 : vector<64x128xf32> to vector<8x8x128xf32>
    %cst_4 = arith.constant dense<0.000000e+00> : vector<8x128xf32>
    %19 = vector.multi_reduction <add>, %18, %cst_4 [0] : vector<8x8x128xf32> to vector<8x128xf32>
    %20 = arith.addf %0, %19 : vector<8x128xf32>
    %21 = arith.mulf %6, %6 : vector<64x128xf32>
    %22 = vector.shape_cast %21 : vector<64x128xf32> to vector<8x8x128xf32>
    %cst_5 = arith.constant dense<0.000000e+00> : vector<8x128xf32>
    %23 = vector.multi_reduction <add>, %22, %cst_5 [0] : vector<8x8x128xf32> to vector<8x128xf32>
    %24 = arith.addf %0, %23 : vector<8x128xf32>
    %c1_i32 = arith.constant 1 : i32
    %c0_6 = arith.constant 0 : index
    %c0_7 = arith.constant 0 : index
    %c0_8 = arith.constant 0 : index
    %c0_9 = arith.constant 0 : index
    %25 = vector.load %arg3[%c0_6, %c0_7, %c0_8, %c0_9] : memref<1x5x8x128xf32, #tpu.memory_space<vmem>>, vector<1x1x8x128xf32>
    %26 = vector.shape_cast %25 : vector<1x1x8x128xf32> to vector<8x128xf32>
    %27 = vector.shape_cast %9 : vector<8x128xf32> to vector<1x1x8x128xf32>
    tpu.vector_store %arg3[%c0_6, %c0_7, %c0_8, %c0_9], %27 {strides = array<i32>} : memref<1x5x8x128xf32, #tpu.memory_space<vmem>>, vector<1x1x8x128xf32>,
    %c0_10 = arith.constant 0 : index
    %c1 = arith.constant 1 : index
    %c0_11 = arith.constant 0 : index
    %c0_12 = arith.constant 0 : index
    %28 = vector.load %arg3[%c0_10, %c1, %c0_11, %c0_12] : memref<1x5x8x128xf32, #tpu.memory_space<vmem>>, vector<1x1x8x128xf32>
    %29 = vector.shape_cast %28 : vector<1x1x8x128xf32> to vector<8x128xf32>
    %30 = vector.shape_cast %12 : vector<8x128xf32> to vector<1x1x8x128xf32>
    tpu.vector_store %arg3[%c0_10, %c1, %c0_11, %c0_12], %30 {strides = array<i32>} : memref<1x5x8x128xf32, #tpu.memory_space<vmem>>, vector<1x1x8x128xf32>,
    %c0_13 = arith.constant 0 : index
    %c2 = arith.constant 2 : index
    %c0_14 = arith.constant 0 : index
    %c0_15 = arith.constant 0 : index
    %31 = vector.load %arg3[%c0_13, %c2, %c0_14, %c0_15] : memref<1x5x8x128xf32, #tpu.memory_space<vmem>>, vector<1x1x8x128xf32>
    %32 = vector.shape_cast %31 : vector<1x1x8x128xf32> to vector<8x128xf32>
    %33 = vector.shape_cast %16 : vector<8x128xf32> to vector<1x1x8x128xf32>
    tpu.vector_store %arg3[%c0_13, %c2, %c0_14, %c0_15], %33 {strides = array<i32>} : memref<1x5x8x128xf32, #tpu.memory_space<vmem>>, vector<1x1x8x128xf32>,
    %c0_16 = arith.constant 0 : index
    %c3 = arith.constant 3 : index
    %c0_17 = arith.constant 0 : index
    %c0_18 = arith.constant 0 : index
    %34 = vector.load %arg3[%c0_16, %c3, %c0_17, %c0_18] : memref<1x5x8x128xf32, #tpu.memory_space<vmem>>, vector<1x1x8x128xf32>
    %35 = vector.shape_cast %34 : vector<1x1x8x128xf32> to vector<8x128xf32>
    %36 = vector.shape_cast %20 : vector<8x128xf32> to vector<1x1x8x128xf32>
    tpu.vector_store %arg3[%c0_16, %c3, %c0_17, %c0_18], %36 {strides = array<i32>} : memref<1x5x8x128xf32, #tpu.memory_space<vmem>>, vector<1x1x8x128xf32>,
    %c0_19 = arith.constant 0 : index
    %c4 = arith.constant 4 : index
    %c0_20 = arith.constant 0 : index
    %c0_21 = arith.constant 0 : index
    %37 = vector.load %arg3[%c0_19, %c4, %c0_20, %c0_21] : memref<1x5x8x128xf32, #tpu.memory_space<vmem>>, vector<1x1x8x128xf32>
    %38 = vector.shape_cast %37 : vector<1x1x8x128xf32> to vector<8x128xf32>
    %39 = vector.shape_cast %24 : vector<8x128xf32> to vector<1x1x8x128xf32>
    tpu.vector_store %arg3[%c0_19, %c4, %c0_20, %c0_21], %39 {strides = array<i32>} : memref<1x5x8x128xf32, #tpu.memory_space<vmem>>, vector<1x1x8x128xf32>,
    return
  }
  func.func @transform_0(%arg0: i32) -> (i32, i32) {
    %c0_i32 = arith.constant 0 : i32
    %c0_i32_0 = arith.constant 0 : i32
    return %arg0, %c0_i32 : i32, i32
  }
  func.func @transform_1(%arg0: i32) -> (i32, i32) {
    %c0_i32 = arith.constant 0 : i32
    %c0_i32_0 = arith.constant 0 : i32
    return %arg0, %c0_i32 : i32, i32
  }
  func.func @transform_2(%arg0: i32) -> (i32, i32, i32, i32) {
    %c0_i32 = arith.constant 0 : i32
    %c0_i32_0 = arith.constant 0 : i32
    %c0_i32_1 = arith.constant 0 : i32
    %c0_i32_2 = arith.constant 0 : i32
    return %arg0, %c0_i32, %c0_i32_0, %c0_i32_1 : i32, i32, i32, i32
  }
}

</mosaic_0001>

<llo_original>
// kernel: tpu_custom_call.1
$region0: #{tpu_custom_call.1}
  #allocation0 [shape = 'u32[]', space=smem, size = 0x4, offset = 0x4, fixed_abs, tag = 'smem constant byte address 0x4 - core index']
  #allocation1 [shape = 'u32[144,128]{1,0:T(1,128)}', space=vmem, size = 0x12000, scoped, tag = 'internal scratch']
  %s0 = inlined_call_operand.hbm [shape: f32[64,128], index: 0, kind: input, shape index: {}]
  %s1 = inlined_call_operand.hbm [shape: f32[64,128], index: 1, kind: input, shape index: {}]
  %s2 = inlined_call_operand.hbm [shape: f32[1,5,8,128], index: 2, kind: output, shape index: {}]
  %s3 = sld [smem:[#allocation0]]
  $region26: #{tpu_custom_call.1} parent=0
    _
  %s5 = ssub.s32 1, %s3
  %s6 = scalar_select 0, %s5, %s3
  $region1: #{tpu_custom_call.1} parent=0
    #allocation2 [shape = 'u8[32768]{0}', space=vmem, size = 0x8000, scoped, tag = 'input window, operand 0, single buffered']
    #allocation3 [shape = 's32[1]{0}', space=sflag, size = 0x4, scoped, tag = 'scoped memory for tpu_custom_call.1']
    #allocation4 [shape = 's32[1]{0}', space=sflag, size = 0x4, scoped, tag = 'scoped memory for tpu_custom_call.1']
    #allocation5 [shape = 'u8[32768]{0}', space=vmem, size = 0x8000, scoped, tag = 'input window, operand 1, single buffered']
    #allocation6 [shape = 's32[1]{0}', space=sflag, size = 0x4, scoped, tag = 'scoped memory for tpu_custom_call.1']
    #allocation7 [shape = 'u8[20480]{0}', space=vmem, size = 0x5000, scoped, tag = 'output window, operand 0, single buffered']
    %7 = vsyncpa [#allocation3], 0
    %8 = vsyncpa [#allocation6], 0
    %9 = vsyncpa [#allocation4], 0
    // Predicated region
    $region2: #{tpu_custom_call.1} parent=1 // pred_check
      _
    $region3: #{tpu_custom_call.1} parent=1 // pred_check_branch
      %11 = sbr.rel (0) target = $region5
    $region4: #{tpu_custom_call.1} parent=1 // pred_region
      %s13 = ssub.s32 1024, 1024
      %14 = vsyncadd [#allocation3], %s13
      %s15 = sshll.u32 [#allocation2], 4
      %s16 = int_to_ptr.vmem [resolvable:$true] %s15
      %21 = dma.hbm_to_vmem [thread:$0]  %s0, 1024, %s16, [#allocation3], 128, 128, 8
    $region5: #{tpu_custom_call.1} parent=1 // pred_fallthru
      _
    // Predicated region
    $region6: #{tpu_custom_call.1} parent=1 // pred_check
      _
    $region7: #{tpu_custom_call.1} parent=1 // pred_check_branch
      %23 = sbr.rel (0) target = $region9
    $region8: #{tpu_custom_call.1} parent=1 // pred_region
      %s25 = ssub.s32 1024, 1024
      %26 = vsyncadd [#allocation6], %s25
      %s27 = sshll.u32 [#allocation5], 4
      %s28 = int_to_ptr.vmem [resolvable:$true] %s27
      %33 = dma.hbm_to_vmem [thread:$0]  %s1, 1024, %s28, [#allocation6], 128, 128, 8
    $region9: #{tpu_custom_call.1} parent=1 // pred_fallthru
      _
    // Predicated region
    $region10: #{tpu_custom_call.1} parent=1 // pred_check
      _
    $region11: #{tpu_custom_call.1} parent=1 // pred_check_branch
      %35 = sbr.rel (0) target = $region13
    $region12: #{tpu_custom_call.1} parent=1 // pred_region
      %36 = dma.done [#allocation3], 1024
    $region13: #{tpu_custom_call.1} parent=1 // pred_fallthru
      _
    // Predicated region
    $region14: #{tpu_custom_call.1} parent=1 // pred_check
      _
    $region15: #{tpu_custom_call.1} parent=1 // pred_check_branch
      %38 = sbr.rel (0) target = $region17
    $region16: #{tpu_custom_call.1} parent=1 // pred_region
      %39 = dma.done [#allocation6], 1024
    $region17: #{tpu_custom_call.1} parent=1 // pred_fallthru
      _
    %v40 = vld [vmem:[#allocation2] sm:$0xff]
    %v41 = vld [vmem:[#allocation2 + $0x8] sm:$0xff]
    %v42 = vld [vmem:[#allocation2 + $0x10] sm:$0xff]
    %v43 = vld [vmem:[#allocation2 + $0x18] sm:$0xff]
    %v44 = vld [vmem:[#allocation2 + $0x20] sm:$0xff]
    %v45 = vld [vmem:[#allocation2 + $0x28] sm:$0xff]
    %v46 = vld [vmem:[#allocation2 + $0x30] sm:$0xff]
    %v47 = vld [vmem:[#allocation2 + $0x38] sm:$0xff]
    %v48 = vld [vmem:[#allocation5] sm:$0xff]
    %v49 = vld [vmem:[#allocation5 + $0x8] sm:$0xff]
    %v50 = vld [vmem:[#allocation5 + $0x10] sm:$0xff]
    %v51 = vld [vmem:[#allocation5 + $0x18] sm:$0xff]
    %v52 = vld [vmem:[#allocation5 + $0x20] sm:$0xff]
    %v53 = vld [vmem:[#allocation5 + $0x28] sm:$0xff]
    %v54 = vld [vmem:[#allocation5 + $0x30] sm:$0xff]
    %v55 = vld [vmem:[#allocation5 + $0x38] sm:$0xff]
    %v56 = vadd.f32 %v40, %v41
    %v57 = vadd.f32 %v56, %v42
    %v58 = vadd.f32 %v57, %v43
    %v59 = vadd.f32 %v58, %v44
    %v60 = vadd.f32 %v59, %v45
    %v61 = vadd.f32 %v60, %v46
    %v62 = vadd.f32 %v61, %v47
    %v63 = vadd.f32 %v62, 0.0
    %v64 = vadd.f32 %v48, %v49
    %v65 = vadd.f32 %v64, %v50
    %v66 = vadd.f32 %v65, %v51
    %v67 = vadd.f32 %v66, %v52
    %v68 = vadd.f32 %v67, %v53
    %v69 = vadd.f32 %v68, %v54
    %v70 = vadd.f32 %v69, %v55
    %v71 = vadd.f32 %v70, 0.0
    %v72 = vmul.f32 %v40, %v48
    %v73 = vmul.f32 %v41, %v49
    %v74 = vmul.f32 %v42, %v50
    %v75 = vmul.f32 %v43, %v51
    %v76 = vmul.f32 %v44, %v52
    %v77 = vmul.f32 %v45, %v53
    %v78 = vmul.f32 %v46, %v54
    %v79 = vmul.f32 %v47, %v55
    %v80 = vadd.f32 %v72, %v73
    %v81 = vadd.f32 %v80, %v74
    %v82 = vadd.f32 %v81, %v75
    %v83 = vadd.f32 %v82, %v76
    %v84 = vadd.f32 %v83, %v77
    %v85 = vadd.f32 %v84, %v78
    %v86 = vadd.f32 %v85, %v79
    %v87 = vadd.f32 %v86, 0.0
    %v88 = vmul.f32 %v40, %v40
    %v89 = vmul.f32 %v41, %v41
    %v90 = vmul.f32 %v42, %v42
    %v91 = vmul.f32 %v43, %v43
    %v92 = vmul.f32 %v44, %v44
    %v93 = vmul.f32 %v45, %v45
    %v94 = vmul.f32 %v46, %v46
    %v95 = vmul.f32 %v47, %v47
    %v96 = vadd.f32 %v88, %v89
    %v97 = vadd.f32 %v96, %v90
    %v98 = vadd.f32 %v97, %v91
    %v99 = vadd.f32 %v98, %v92
    %v100 = vadd.f32 %v99, %v93
    %v101 = vadd.f32 %v100, %v94
    %v102 = vadd.f32 %v101, %v95
    %v103 = vadd.f32 %v102, 0.0
    %v104 = vmul.f32 %v48, %v48
    %v105 = vmul.f32 %v49, %v49
    %v106 = vmul.f32 %v50, %v50
    %v107 = vmul.f32 %v51, %v51
    %v108 = vmul.f32 %v52, %v52
    %v109 = vmul.f32 %v53, %v53
    %v110 = vmul.f32 %v54, %v54
    %v111 = vmul.f32 %v55, %v55
    %v112 = vadd.f32 %v104, %v105
    %v113 = vadd.f32 %v112, %v106
    %v114 = vadd.f32 %v113, %v107
    %v115 = vadd.f32 %v114, %v108
    %v116 = vadd.f32 %v115, %v109
    %v117 = vadd.f32 %v116, %v110
    %v118 = vadd.f32 %v117, %v111
    %v119 = vadd.f32 %v118, 0.0
    %120 = vst [vmem:[#allocation7] sm:$0xff] %v63
    %s121 = scalar_lea.vmem [#allocation7], 8
    %122 = vst [vmem:[%s121] sm:$0xff] %v71
    %s123 = scalar_lea.vmem [#allocation7], 16
    %124 = vst [vmem:[%s123] sm:$0xff] %v87
    %s125 = scalar_lea.vmem [#allocation7], 24
    %126 = vst [vmem:[%s125] sm:$0xff] %v103
    %s127 = scalar_lea.vmem [#allocation7], 32
    %128 = vst [vmem:[%s127] sm:$0xff] %v119
    // Predicated region
    $region18: #{tpu_custom_call.1} parent=1 // pred_check
      _
    $region19: #{tpu_custom_call.1} parent=1 // pred_check_branch
      %130 = sbr.rel (0) target = $region21
    $region20: #{tpu_custom_call.1} parent=1 // pred_region
      %s132 = ssub.s32 640, 640
      %133 = vsyncadd [#allocation4], %s132
      %s134 = sshll.u32 [#allocation7], 4
      %s135 = int_to_ptr.vmem [resolvable:$true] %s134
      %140 = dma.vmem_to_hbm [thread:$0]  %s135, 640, %s2, [#allocation4], 128, 128, 8
    $region21: #{tpu_custom_call.1} parent=1 // pred_fallthru
      _
    // Predicated region
    $region22: #{tpu_custom_call.1} parent=1 // pred_check
      _
    $region23: #{tpu_custom_call.1} parent=1 // pred_check_branch
      %142 = sbr.rel (0) target = $region25
    $region24: #{tpu_custom_call.1} parent=1 // pred_region
      %143 = dma.done [#allocation4], 640
    $region25: #{tpu_custom_call.1} parent=1 // pred_fallthru
      _
    %144 = vsyncpa [#allocation3], 1
    %145 = vsyncpa [#allocation6], 1
    %146 = vsyncpa [#allocation4], 1

</llo_original>
